<compile_context>
chip_gen: v7x
topology: tpu7x:2x2x1
jax: 0.10.0
libtpu: 0.0.40
codegen_flags: <defaults>
</compile_context>

<pallas_src>
import jax
import jax.numpy as jnp
from jax.experimental import pallas as pl
from jax.experimental.pallas import tpu as pltpu


# ----------------------------- in-kernel helpers -----------------------------

def _softmax_lastdim(x):
    # numerically-stable softmax over the last (lane) axis; single reciprocal
    m = jnp.max(x, axis=-1, keepdims=True)
    e = jnp.exp(x - m)
    return e * pl.reciprocal(jnp.sum(e, axis=-1, keepdims=True))


# --------------------------------- kernels -----------------------------------
# Per grid step the kernel handles TB batch rows:
#   enc_ref : (TB, S, H)   s_ref : (TB, H)   out_ref : (TB, S)

def _dot_kernel(enc_ref, s_ref, out_ref):
    enc = enc_ref[...]                                        # (TB, S, H)
    s = s_ref[...]                                            # (TB, H)
    alpha = jnp.sum(enc * s[:, None, :], axis=-1)             # (TB, S) VPU + lane reduce
    out_ref[...] = _softmax_lastdim(alpha)


def _general_kernel(enc_ref, s_ref, w_ref, out_ref):
    enc = enc_ref[...]                                        # (TB, S, H)
    # (enc @ W.T + b) . s  ->  enc . (s @ W); the bias is a per-row constant
    # over the sequence axis and cancels in the softmax.
    ws = jnp.dot(s_ref[...], w_ref[...],
                 preferred_element_type=jnp.float32)          # (TB, H) small MXU matmul
    alpha = jnp.sum(enc * ws[:, None, :], axis=-1)            # (TB, S)
    out_ref[...] = _softmax_lastdim(alpha)


def _concat_kernel(enc_ref, s_ref, w1_ref, w2_ref, v_ref, out_ref):
    tb, seq, hid = enc_ref.shape
    # Fold all TB*S rows into a single MXU matmul (M = TB*S).
    enc2 = enc_ref[...].reshape(tb * seq, hid)                # (TB*S, H)
    enc_proj = jnp.dot(enc2, w1_ref[...],
                       preferred_element_type=jnp.float32)    # (TB*S, H) main MXU matmul
    enc_proj = enc_proj.reshape(tb, seq, hid)                 # (TB, S, H)
    s_proj = jnp.dot(s_ref[...], w2_ref[...],
                     preferred_element_type=jnp.float32)      # (TB, H) small MXU matmul
    mul = jnp.tanh(enc_proj + s_proj[:, None, :])             # (TB, S, H) EUP tanh
    # v-projection as VPU multiply + lane reduce instead of an N=1 MXU matmul.
    alpha = jnp.sum(mul * v_ref[...], axis=-1)                # (TB, S)
    out_ref[...] = _softmax_lastdim(alpha)


# --------------------------------- wrapper ------------------------------------

def _choose_tb(B, S, H, elem_bytes=4):
    """Rows per grid step: ~4 MiB enc blocks, multiple of 8, capped at 64."""
    per_row = max(1, S * H * elem_bytes)
    tb = (4 << 20) // per_row
    tb = max(8, min(64, tb))
    tb = max(8, (tb // 8) * 8)
    if B <= tb:
        return B          # block == full array dims -> always-legal layout
    return tb


def global_attention(enc_output, s, params, method):
    """Pallas implementation of GlobalAttention.forward.

    enc_output: [B, S, H] f32, s: [B, H] f32 -> softmax(alpha_hat) over dim 1, [B, S].
    """
    B, S, H = enc_output.shape
    enc_output = enc_output.astype(jnp.float32)
    s2 = s.astype(jnp.float32)

    # ---- batch tiling: TB rows per grid step, pad B to a multiple of TB ----
    TB = _choose_tb(B, S, H)
    nblk = pl.cdiv(B, TB)
    B_pad = nblk * TB
    if B_pad != B:
        pad = B_pad - B
        enc_output = jnp.pad(enc_output, ((0, pad), (0, 0), (0, 0)))
        s2 = jnp.pad(s2, ((0, pad), (0, 0)))

    enc_spec = pl.BlockSpec((TB, S, H), lambda b: (b, 0, 0))
    s_spec = pl.BlockSpec((TB, H), lambda b: (b, 0))
    out_spec = pl.BlockSpec((TB, S), lambda b: (b, 0))       # lane/sublane-dense stores

    def resident(shape):  # weights: constant index_map -> stay in VMEM all grid long
        nd = len(shape)
        return pl.BlockSpec(shape, lambda b: (0,) * nd)

    if method == "dot":
        kernel = _dot_kernel
        args = (enc_output, s2)
        in_specs = [enc_spec, s_spec]
        weight_bytes = 0
        flops = 2 * B * S * H
        transc = B * S
        nbytes = 4 * (B * S * H + B * H + B * S)
    elif method == "general":
        w = params["attn_w"].astype(jnp.float32)              # (H, H) torch [out, in]; kernel does s @ W
        kernel = _general_kernel
        args = (enc_output, s2, w)
        in_specs = [enc_spec, s_spec, resident((H, H))]
        weight_bytes = 4 * H * H
        flops = 2 * B * H * H + 2 * B * S * H
        transc = B * S
        nbytes = 4 * (B * S * H + B * H + H * H + B * S)
    elif method == "concat":
        # nn.Linear(2H, H, bias=False): y = cat @ W.T ; split W.T by input half
        w_t = params["attn_w"].astype(jnp.float32).T          # (2H, H)
        w1, w2 = w_t[:H, :], w_t[H:, :]                       # each (H, H)
        v = params["v_w"].astype(jnp.float32)                 # (1, H)
        kernel = _concat_kernel
        args = (enc_output, s2, w1, w2, v)
        in_specs = [enc_spec, s_spec, resident((H, H)), resident((H, H)), resident((1, H))]
        weight_bytes = 4 * (2 * H * H + H)
        flops = 2 * B * S * H * H + 2 * B * H * H + 3 * B * S * H
        transc = B * S * H + B * S
        nbytes = 4 * (B * S * H + B * H + 2 * H * H + H + B * S)
    else:
        raise ValueError(f"unknown method {method!r}")

    # Scoped-VMEM limit: double-buffered blocks + (double-buffered) resident
    # weights + slack, clamped to <= 64 MiB so it is safe on v7x and still lifts
    # v5e's 16 MiB default.
    block_bytes = 4 * (TB * S * H + TB * H + TB * S)
    vmem_est = 2 * block_bytes + 2 * weight_bytes + (2 << 20)
    vmem_limit = int(min(max(vmem_est, 32 << 20), 64 << 20))

    out_pad = pl.pallas_call(
        kernel,
        out_shape=jax.ShapeDtypeStruct((B_pad, S), jnp.float32),
        grid=(nblk,),
        in_specs=in_specs,
        out_specs=out_spec,
        compiler_params=pltpu.CompilerParams(
            dimension_semantics=("parallel",),  # megacore-splittable batch axis
            vmem_limit_bytes=vmem_limit,
        ),
        cost_estimate=pl.CostEstimate(
            flops=int(flops), transcendentals=int(transc), bytes_accessed=int(nbytes)),
    )(*args)
    return out_pad[:B]


# ------------------------------ pure-JAX reference ----------------------------

def global_attention_ref(enc_output, s, params, method):
    B, S, H = enc_output.shape
    if method == "dot":
        alpha = jnp.einsum("bsh,bh->bs", enc_output, s)
    elif method == "general":
        proj = enc_output @ params["attn_w"].T + params["attn_b"]
        alpha = jnp.einsum("bsh,bh->bs", proj, s)
    elif method == "concat":
        s_rep = jnp.broadcast_to(s[:, None, :], (B, S, H))
        cat = jnp.concatenate([enc_output, s_rep], axis=2)      # [B, S, 2H]
        mul = jnp.tanh(cat @ params["attn_w"].T)                # [B, S, H]
        alpha = (mul @ params["v_w"].T)[..., 0]                 # [B, S]
    else:
        raise ValueError(method)
    return jax.nn.softmax(alpha, axis=1)


# ----------------------------------- main --------------------------------------

if __name__ == "__main__":
    B, S, H = 2, 8, 32
    key = jax.random.PRNGKey(0)
    k_enc, k_s, k_vw, k_gw, k_gb, k_cw = jax.random.split(key, 6)

    enc_output = jax.random.normal(k_enc, (B, S, H), dtype=jnp.float32)
    s = jax.random.normal(k_s, (B, H), dtype=jnp.float32)

    # PyTorch layer shapes: weight = [out_features, in_features].
    params = {
        "v_w": jax.random.normal(k_vw, (1, H), dtype=jnp.float32) * 0.1,       # Linear(H, 1, bias=False)
        "attn_w": None,                                                         # set per-method below
        "attn_b": jax.random.normal(k_gb, (H,), dtype=jnp.float32) * 0.1,       # bias for 'general'
    }
    attn_w_general = jax.random.normal(k_gw, (H, H), dtype=jnp.float32) * 0.1       # Linear(H, H)
    attn_w_concat = jax.random.normal(k_cw, (H, 2 * H), dtype=jnp.float32) * 0.1    # Linear(2H, H, bias=False)

    ok = True
    for method in ("dot", "general", "concat"):
        p = dict(params)
        p["attn_w"] = attn_w_concat if method == "concat" else attn_w_general
        out = global_attention(enc_output, s, p, method)
        out = jax.block_until_ready(out)
        ref = global_attention_ref(enc_output, s, p, method)
        assert out.shape == (B, S) and out.dtype == jnp.float32
        if not jnp.allclose(out, ref, atol=1e-5, rtol=1e-5):
            ok = False
            print(f"mismatch for method={method}")
        if not jnp.allclose(jnp.sum(out, axis=1), jnp.ones((B,)), atol=1e-5):
            ok = False
            print(f"softmax rows don't sum to 1 for method={method}")

    if ok:
        print("KERNEL_OK")
</pallas_src>

<mosaic_0001>
module attributes {stable_mosaic.version = 11 : i64} {
  func.func @_dot_kernel(%arg0: i32, %arg1: memref<2x8x32xf32, #tpu.memory_space<vmem>>, %arg2: memref<2x32xf32, #tpu.memory_space<vmem>>, %arg3: memref<2x8xf32, #tpu.memory_space<vmem>>) attributes {dimension_semantics = [#tpu.dimension_semantics<parallel>], iteration_bounds = array<i64: 1>, scalar_prefetch = 0 : i64, scratch_operands = 0 : i64, tpu.core_type = #tpu.core_type<tc>, window_params = [{transform_indices = @transform_0, window_bounds = array<i64: 2, 8, 32>}, {transform_indices = @transform_1, window_bounds = array<i64: 2, 32>}, {transform_indices = @transform_2, window_bounds = array<i64: 2, 8>}]} {
    %c0 = arith.constant 0 : index
    %c0_0 = arith.constant 0 : index
    %c0_1 = arith.constant 0 : index
    %0 = vector.load %arg1[%c0, %c0_0, %c0_1] : memref<2x8x32xf32, #tpu.memory_space<vmem>>, vector<2x8x32xf32>
    %c0_2 = arith.constant 0 : index
    %c0_3 = arith.constant 0 : index
    %1 = vector.load %arg2[%c0_2, %c0_3] : memref<2x32xf32, #tpu.memory_space<vmem>>, vector<2x32xf32>
    %2 = vector.shape_cast %1 : vector<2x32xf32> to vector<2x1x32xf32>
    %3 = vector.broadcast %2 : vector<2x1x32xf32> to vector<2x8x32xf32>
    %4 = arith.mulf %0, %3 : vector<2x8x32xf32>
    %cst = arith.constant dense<0.000000e+00> : vector<2x8xf32>
    %5 = vector.multi_reduction <add>, %4, %cst [2] : vector<2x8x32xf32> to vector<2x8xf32>
    %cst_4 = arith.constant dense<0xFF800000> : vector<2xf32>
    %6 = vector.multi_reduction <maximumf>, %5, %cst_4 [1] : vector<2x8xf32> to vector<2xf32>
    %7 = vector.shape_cast %6 : vector<2xf32> to vector<2x1xf32>
    %8 = vector.broadcast %7 : vector<2x1xf32> to vector<2x8xf32>
    %9 = arith.subf %5, %8 : vector<2x8xf32>
    %10 = math.exp %9 : vector<2x8xf32>
    %cst_5 = arith.constant dense<0.000000e+00> : vector<2xf32>
    %11 = vector.multi_reduction <add>, %10, %cst_5 [1] : vector<2x8xf32> to vector<2xf32>
    %12 = vector.shape_cast %11 : vector<2xf32> to vector<2x1xf32>
    %13 = tpu.reciprocal %12 : vector<2x1xf32> -> vector<2x1xf32>
    %14 = vector.broadcast %13 : vector<2x1xf32> to vector<2x8xf32>
    %15 = arith.mulf %10, %14 : vector<2x8xf32>
    %c0_6 = arith.constant 0 : index
    %c0_7 = arith.constant 0 : index
    %16 = vector.load %arg3[%c0_6, %c0_7] : memref<2x8xf32, #tpu.memory_space<vmem>>, vector<2x8xf32>
    tpu.vector_store %arg3[%c0_6, %c0_7], %15 {strides = array<i32>} : memref<2x8xf32, #tpu.memory_space<vmem>>, vector<2x8xf32>,
    return
  }
  func.func @transform_0(%arg0: i32) -> (i32, i32, i32) {
    %c0_i32 = arith.constant 0 : i32
    %c0_i32_0 = arith.constant 0 : i32
    %c0_i32_1 = arith.constant 0 : i32
    return %arg0, %c0_i32, %c0_i32_0 : i32, i32, i32
  }
  func.func @transform_1(%arg0: i32) -> (i32, i32) {
    %c0_i32 = arith.constant 0 : i32
    %c0_i32_0 = arith.constant 0 : i32
    return %arg0, %c0_i32 : i32, i32
  }
  func.func @transform_2(%arg0: i32) -> (i32, i32) {
    %c0_i32 = arith.constant 0 : i32
    %c0_i32_0 = arith.constant 0 : i32
    return %arg0, %c0_i32 : i32, i32
  }
}

</mosaic_0001>

<llo_original>
// kernel: tpu_custom_call.1
$region0: #{tpu_custom_call.1}
  #allocation0 [shape = 'u32[]', space=smem, size = 0x4, offset = 0x4, fixed_abs, tag = 'smem constant byte address 0x4 - core index']
  #allocation1 [shape = 'u32[144,128]{1,0:T(1,128)}', space=vmem, size = 0x12000, scoped, tag = 'internal scratch']
  %s0 = inlined_call_operand.hbm [shape: f32[2,8,32], index: 0, kind: input, shape index: {}]
  %s1 = inlined_call_operand.vmem [shape: f32[2,32], index: 1, kind: input, shape index: {}]
  %s2 = inlined_call_operand.hbm [shape: f32[2,8], index: 2, kind: output, shape index: {}]
  %s3 = sld [smem:[#allocation0]]
  $region22: #{tpu_custom_call.1} parent=0
    _
  %s5 = ssub.s32 1, %s3
  %s6 = scalar_select 0, %s5, %s3
  $region1: #{tpu_custom_call.1} parent=0
    #allocation2 [shape = 'u8[8192]{0}', space=vmem, size = 0x2000, scoped, tag = 'input window, operand 0, single buffered']
    #allocation3 [shape = 's32[1]{0}', space=sflag, size = 0x4, scoped, tag = 'scoped memory for tpu_custom_call.1']
    #allocation4 [shape = 's32[1]{0}', space=sflag, size = 0x4, scoped, tag = 'scoped memory for tpu_custom_call.1']
    #allocation5 [shape = 'u8[1024]{0}', space=vmem, size = 0x400, scoped, tag = 'output window, operand 0, single buffered']
    %7 = vsyncpa [#allocation3], 0
    %8 = vsyncpa [#allocation4], 0
    // Predicated region
    $region2: #{tpu_custom_call.1} parent=1 // pred_check
      _
    $region3: #{tpu_custom_call.1} parent=1 // pred_check_branch
      %10 = sbr.rel (0) target = $region5
    $region4: #{tpu_custom_call.1} parent=1 // pred_region
      %s12 = ssub.s32 256, 256
      %13 = vsyncadd [#allocation3], %s12
      %s14 = sshll.u32 [#allocation2], 4
      %s15 = int_to_ptr.vmem [resolvable:$true] %s14
      %20 = dma.hbm_to_vmem [thread:$0]  %s0, 256, %s15, [#allocation3], 128, 128, 8
    $region5: #{tpu_custom_call.1} parent=1 // pred_fallthru
      _
    // Predicated region
    $region6: #{tpu_custom_call.1} parent=1 // pred_check
      _
    $region7: #{tpu_custom_call.1} parent=1 // pred_check_branch
      %22 = sbr.rel (0) target = $region9
    $region8: #{tpu_custom_call.1} parent=1 // pred_region
      _
    $region9: #{tpu_custom_call.1} parent=1 // pred_fallthru
      _
    // Predicated region
    $region10: #{tpu_custom_call.1} parent=1 // pred_check
      _
    $region11: #{tpu_custom_call.1} parent=1 // pred_check_branch
      %24 = sbr.rel (0) target = $region13
    $region12: #{tpu_custom_call.1} parent=1 // pred_region
      %25 = dma.done [#allocation3], 256
    $region13: #{tpu_custom_call.1} parent=1 // pred_fallthru
      _
    %v26 = vld [vmem:[#allocation2] sm:$0xff]
    %v27 = vld [vmem:[#allocation2 + $0x8] sm:$0xff]
    %v28 = vld [vmem:[%s1] sm:$0x3]
    %v31 = vunpack.c.l.s4 1966171168
    %v32 = vunpack.c.0.s8 %v31
    %v33 = vlaneseq
    %v34 = vshrl.u32 %v33, 7
    %v35 = vsub.s32 %v32, %v34
    %v36 = vrot.slane %v28, %v35
    %v37 = vcombine.high %v36, %v36
    %v39 = vunpack.c.l.s4 1966171168
    %v40 = vunpack.c.0.s8 %v39
    %v41 = vlaneseq
    %v42 = vshrl.u32 %v41, 7
    %v43 = vsub.s32 %v40, %v42
    %v44 = vrot.slane %v36, %v43
    %v46 = vunpack.c.l.s4 1966171168
    %v47 = vunpack.c.0.s8 %v46
    %v48 = vlaneseq
    %v49 = vshrl.u32 %v48, 7
    %v50 = vsub.s32 %v47, %v49
    %v51 = vrot.slane %v37, %v50
    %v52 = vlaneseq
    %v53 = vshrl.u32 %v52, 7
    %v54 = vsub.s32 0, %v53
    %v55 = vrot.slane %v44, %v54
    %v56 = vlaneseq
    %v57 = vshrl.u32 %v56, 7
    %v58 = vsub.s32 0, %v57
    %v59 = vrot.slane %v51, %v58
    %v62 = vmul.f32 %v26, %v55
    %v63 = vmul.f32 %v27, %v59
    %vm64 = vcmask 261120
    %v65 = vsel %vm64, %v62, 0.0
    %66 = vadd.xlane.f32.xlu0 %v65
    %v67 = vpop.xlane.xlu0 %66
    %v68 = vsel %vm64, %v63, 0.0
    %69 = vadd.xlane.f32.xlu0 %v68
    %v70 = vpop.xlane.xlu0 %69
    %v73 = vlaneseq
    %v74 = vand.u32 %v73, 127
    %v75 = vlaneseq
    %v76 = vshrl.u32 %v75, 7
    %v77 = vsub.s32 %v74, %v76
    %v78 = vrot.slane %v67, %v77
    %v79 = vlaneseq
    %v80 = vshrl.u32 %v79, 7
    %v81 = vsub.s32 %v74, %v80
    %v82 = vrot.slane %v70, %v81
    %vm83 = vcmask 1041409
    %v84 = vsel %vm83, %v82, %v78
    %vm86 = vcmask 58368
    %v87 = vsel %vm86, %v84, -inf
    %88 = vmax.xlane.f32.xlu0 %v87
    %v89 = vpop.xlane.xlu0 %88
    %v91 = vlaneseq
    %v92 = vshrl.u32 %v91, 7
    %v93 = vsub.s32 0, %v92
    %v94 = vrot.slane %v89, %v93
    %v95 = vlaneseq
    %v96 = vshrl.u32 %v95, 7
    %v97 = vsub.s32 1, %v96
    %v98 = vrot.slane %v89, %v97
    %v101 = vsub.f32 %v67, %v94
    %v102 = vsub.f32 %v70, %v98
    %v103 = vmul.f32 %v101, 1.442695
    %v104 = vpow.pop %v103
    %v105 = vmul.f32 %v102, 1.442695
    %v106 = vpow.pop %v105
    %109 = vset.pattern.permute.xlu0 0
    %110 = vperm.xlu0 %109, %v104
    %v111 = vpop.permute.xlu0 %110
    %112 = vset.pattern.permute.xlu0 0
    %113 = vperm.xlu0 %112, %v106
    %v114 = vpop.permute.xlu0 %113
    %v115 = vlaneseq
    %v116 = vshrl.u32 %v115, 7
    %v117 = vsub.s32 %v74, %v116
    %v118 = vrot.slane %v111, %v117
    %v119 = vlaneseq
    %v120 = vshrl.u32 %v119, 7
    %v121 = vsub.s32 %v74, %v120
    %v122 = vrot.slane %v114, %v121
    %v123 = vsel %vm83, %v122, %v118
    %v125 = vsel %vm86, %v123, 0.0
    %126 = vadd.xlane.f32.xlu0 %v125
    %v127 = vpop.xlane.xlu0 %126
    %v128 = vrcp.pop %v127
    %v130 = vlaneseq
    %v131 = vshrl.u32 %v130, 7
    %v132 = vsub.s32 0, %v131
    %v133 = vrot.slane %v128, %v132
    %v134 = vlaneseq
    %v135 = vshrl.u32 %v134, 7
    %v136 = vsub.s32 1, %v135
    %v137 = vrot.slane %v128, %v136
    %v140 = vmul.f32 %v104, %v133
    %v141 = vmul.f32 %v106, %v137
    %144 = vset.pattern.permute.xlu0 0
    %145 = vperm.xlu0 %144, %v140
    %v146 = vpop.permute.xlu0 %145
    %147 = vset.pattern.permute.xlu0 0
    %148 = vperm.xlu0 %147, %v141
    %v149 = vpop.permute.xlu0 %148
    %v150 = vlaneseq
    %v151 = vshrl.u32 %v150, 7
    %v152 = vsub.s32 %v74, %v151
    %v153 = vrot.slane %v146, %v152
    %v154 = vlaneseq
    %v155 = vshrl.u32 %v154, 7
    %v156 = vsub.s32 %v74, %v155
    %v157 = vrot.slane %v149, %v156
    %v158 = vsel %vm83, %v157, %v153
    %160 = vst.msk [vmem:[#allocation5] sm:$0x3] %vm86, %v158
    // Predicated region
    $region14: #{tpu_custom_call.1} parent=1 // pred_check
      _
    $region15: #{tpu_custom_call.1} parent=1 // pred_check_branch
      %162 = sbr.rel (0) target = $region17
    $region16: #{tpu_custom_call.1} parent=1 // pred_region
      %s164 = ssub.s32 32, 32
      %165 = vsyncadd [#allocation4], %s164
      %s167 = sshll.u32 [#allocation5], 4
      %s168 = int_to_ptr.vmem [resolvable:$true] %s167
      %170 = dma.vmem_to_hbm [thread:$0]  %s168, 32, %s2, [#allocation4]
    $region17: #{tpu_custom_call.1} parent=1 // pred_fallthru
      _
    // Predicated region
    $region18: #{tpu_custom_call.1} parent=1 // pred_check
      _
    $region19: #{tpu_custom_call.1} parent=1 // pred_check_branch
      %172 = sbr.rel (0) target = $region21
    $region20: #{tpu_custom_call.1} parent=1 // pred_region
      %173 = dma.done [#allocation4], 32
    $region21: #{tpu_custom_call.1} parent=1 // pred_fallthru
      _
    %174 = vsyncpa [#allocation3], 1
    %175 = vsyncpa [#allocation4], 1

</llo_original>
